<compile_context>
chip_gen: v5e
topology: v5e:2x2
jax: 0.10.0
libtpu: 0.0.40
codegen_flags: <defaults>
</compile_context>

<pallas_src>
import numpy as np
import jax
import jax.numpy as jnp
from jax.experimental import pallas as pl
from jax.experimental.pallas import tpu as pltpu


# ----------------------------------------------------------------------------
# Pallas kernel: one (batch, spatial-tile) grid step of the PyramidFC forward.
# ----------------------------------------------------------------------------
def pyramid_fc_kernel(x_ref, mt_ref, wcat_ref, w4_ref, bias_ref, o_ref):
    # x_ref    : (1, C, S)       bf16  -- full spatial extent (needed for the
    #                                     global-avg-pool branch; every output
    #                                     tile also reads all of x)
    # mt_ref   : (3, S, TILE_S)  bf16  -- M_i^T slices for this output tile
    # wcat_ref : (P, 3C)         bf16  -- [W''_1 | W''_2 | W''_3]  (dw-BN and
    #                                     pw-BN affines folded into the 1x1 weights)
    # w4_ref   : (P, C)          f32   -- branch-4 1x1 conv with its BN scale folded in
    # bias_ref : (P, 1)          f32   -- all folded biases (dw-BN shifts pushed
    #                                     through the 1x1 convs + pw-BN shifts)
    # o_ref    : (1, P, TILE_S)  f32
    x = x_ref[0]                                                      # (C, S) bf16

    # Branches 1..3: spatial mixing (shared depthwise conv + folded nearest
    # upsample) as bf16 MXU matmuls with f32 accumulation.
    # NOTE: for large H*W this dense S x S formulation should be replaced by a
    # banded one (each TILE_S output slice only touches a k*W-wide band of x).
    t = [jnp.dot(x, mt_ref[i], preferred_element_type=jnp.float32)    # (C, TILE_S)
         for i in range(3)]
    t_cat = jnp.concatenate(t, axis=0).astype(jnp.bfloat16)           # (3C, TILE_S)

    # Fused 1x1 convs of all three branches (one matmul, K = 3C).
    y = jnp.dot(wcat_ref[...], t_cat,
                preferred_element_type=jnp.float32)                   # (P, TILE_S)

    # Branch 4: AdaptiveAvgPool2d(1) -> 1x1 conv (BN scale folded), broadcast
    # over space.  Tiny, kept in f32.
    g = jnp.mean(x.astype(jnp.float32), axis=1, keepdims=True)        # (C, 1)
    y4 = jnp.dot(w4_ref[...], g, preferred_element_type=jnp.float32)  # (P, 1)

    s = y + y4 + bias_ref[...]                                        # lane broadcast
    # exact GELU (nn.GELU default): 0.5 * x * (1 + erf(x / sqrt(2)))
    o_ref[0] = (0.5 * s * (1.0 + jax.lax.erf(s * 0.7071067811865476))).astype(o_ref.dtype)


def pyramid_fc_pallas(x_nchw, mt_stk, w_cat, w4, bias, *, tile_s=128):
    B, C, H, W = x_nchw.shape
    S = H * W
    P, C3 = w_cat.shape

    # Spatial tiling: TILE_S must be a multiple of 128 and divide S; otherwise
    # fall back to a single full-width spatial tile (still a legal block).
    if S % 128 != 0 or S % tile_s != 0 or tile_s % 128 != 0:
        tile_s = S
    n_s = S // tile_s

    # NCHW -> (B, C, S) is a pure reshape (no transpose / extra HBM pass).
    x = x_nchw.reshape(B, C, S).astype(jnp.bfloat16)

    out = pl.pallas_call(
        pyramid_fc_kernel,
        out_shape=jax.ShapeDtypeStruct((B, P, S), jnp.float32),
        grid_spec=pltpu.PrefetchScalarGridSpec(
            num_scalar_prefetch=0,
            grid=(B, n_s),
            in_specs=[
                pl.BlockSpec((1, C, S), lambda b, s: (b, 0, 0)),        # x (full S)
                pl.BlockSpec((3, S, tile_s), lambda b, s: (0, 0, s)),   # M^T slices
                pl.BlockSpec((P, C3), lambda b, s: (0, 0)),             # fused 1x1 weights
                pl.BlockSpec((P, C), lambda b, s: (0, 0)),              # branch-4 weights
                pl.BlockSpec((P, 1), lambda b, s: (0, 0)),              # folded bias
            ],
            out_specs=pl.BlockSpec((1, P, tile_s), lambda b, s: (b, 0, s)),
        ),
        compiler_params=pltpu.CompilerParams(
            dimension_semantics=("parallel", "parallel"),
            vmem_limit_bytes=32 * 1024 * 1024,
        ),
    )(x, mt_stk, w_cat, w4, bias)

    return out.reshape(B, P, H, W)                                      # back to NCHW


# ----------------------------------------------------------------------------
# Glue: build the (upsample o depthwise-conv) spatial matrix from k x k weights.
# ----------------------------------------------------------------------------
def build_conv_matrix(w2d, H, W, stride, pad, up_to=None):
    k = w2d.shape[0]
    Ho = (H + 2 * pad - k) // stride + 1
    Wo = (W + 2 * pad - k) // stride + 1
    T = np.zeros((k * k, Ho * Wo, H * W), np.float32)
    for dy in range(k):
        for dx in range(k):
            t = dy * k + dx
            for i in range(Ho):
                si = i * stride + dy - pad
                if not (0 <= si < H):
                    continue
                for j in range(Wo):
                    sj = j * stride + dx - pad
                    if not (0 <= sj < W):
                        continue
                    T[t, i * Wo + j, si * W + sj] = 1.0
    M = jnp.einsum('t,tos->os', w2d.reshape(-1), jnp.asarray(T))         # (Ho*Wo, H*W)
    if up_to is not None:
        Ht, Wt = up_to
        U = np.zeros((Ht * Wt, Ho * Wo), np.float32)
        for i in range(Ht):
            si = i * Ho // Ht                     # PyTorch 'nearest': floor(i * in/out)
            for j in range(Wt):
                sj = j * Wo // Wt
                U[i * Wt + j, si * Wo + sj] = 1.0
        M = jnp.asarray(U) @ M                                           # (H*W, H*W)
    return M


# ----------------------------------------------------------------------------
# Pure-JAX reference (mirrors the PyTorch module with eval-mode BatchNorm).
# ----------------------------------------------------------------------------
def reference(x_nchw, dw_w, dw_scale, dw_shift, w_pc, pw_scale, pw_shift):
    B, C, H, W = x_nchw.shape
    geoms = [(3, 1, 1), (5, 2, 2), (7, 3, 3)]
    outs = []
    for i, (k, s, p) in enumerate(geoms):
        w = jnp.broadcast_to(dw_w[i][None, None], (C, 1, k, k))
        y = jax.lax.conv_general_dilated(
            x_nchw, w, (s, s), [(p, p), (p, p)],
            feature_group_count=C, dimension_numbers=('NCHW', 'OIHW', 'NCHW'))
        y = y * dw_scale[i][None, :, None, None] + dw_shift[i][None, :, None, None]
        y = jnp.einsum('bchw,pc->bphw', y, w_pc[i])
        y = y * pw_scale[i][None, :, None, None] + pw_shift[i][None, :, None, None]
        if s != 1:
            Hin, Win = y.shape[2], y.shape[3]
            ri = np.arange(H) * Hin // H
            ci = np.arange(W) * Win // W
            y = y[:, :, ri][:, :, :, ci]
        outs.append(y)
    g = jnp.mean(x_nchw, axis=(2, 3), keepdims=True)
    y4 = jnp.einsum('bchw,pc->bphw', g, w_pc[3])
    y4 = y4 * pw_scale[3][None, :, None, None] + pw_shift[3][None, :, None, None]
    total = outs[0] + outs[1] + outs[2] + y4
    return jax.nn.gelu(total, approximate=False)


if __name__ == "__main__":
    B, C_in, C_out, H, W = 2, 8, 16, 16, 16
    S = H * W
    eps = 1e-5

    keys = list(jax.random.split(jax.random.PRNGKey(0), 64))
    nxt = lambda: keys.pop(0)

    # LearnablePool2d weights: nn.init.normal_(w, 0, 0.01), shape (1,1,k,k) -> (k,k)
    dw_w = [jax.random.normal(nxt(), (k, k), jnp.float32) * 0.01 for k in (3, 5, 7)]

    def bn_affine(n):
        gamma = 1.0 + 0.1 * jax.random.normal(nxt(), (n,), jnp.float32)
        beta = 0.1 * jax.random.normal(nxt(), (n,), jnp.float32)
        mean = 0.1 * jax.random.normal(nxt(), (n,), jnp.float32)
        var = 1.0 + 0.1 * jnp.abs(jax.random.normal(nxt(), (n,), jnp.float32))
        scale = gamma / jnp.sqrt(var + eps)
        shift = beta - mean * scale
        return scale, shift

    dw_aff = [bn_affine(C_in) for _ in range(3)]                 # BN inside LearnablePool2d
    w_pc = [jax.random.normal(nxt(), (C_out, C_in), jnp.float32) / np.sqrt(C_in)
            for _ in range(4)]                                   # 1x1 conv weights (P, C)
    pw_aff = [bn_affine(C_out) for _ in range(4)]                # BN inside ConvX

    dw_scale = [a[0] for a in dw_aff]
    dw_shift = [a[1] for a in dw_aff]
    pw_scale = [a[0] for a in pw_aff]
    pw_shift = [a[1] for a in pw_aff]

    # Spatial mixing matrices (nearest upsample folded in for strided branches),
    # stored TRANSPOSED for the (C, S) @ (S, TILE_S) formulation, cast to bf16.
    m1 = build_conv_matrix(dw_w[0], H, W, 1, 1)
    m2 = build_conv_matrix(dw_w[1], H, W, 2, 2, up_to=(H, W))
    m3 = build_conv_matrix(dw_w[2], H, W, 3, 3, up_to=(H, W))
    mt_stk = jnp.stack([m1.T, m2.T, m3.T]).astype(jnp.bfloat16)  # (3, S, S)

    # Fold BN affines into the 1x1 weights and a single bias vector (f32, offline):
    #   branch i (1..3):  y_i = pws_i*(W_i @ (dws_i*(M_i x) + dwb_i)) + pwb_i
    #                         = W''_i @ (M_i x) + [pws_i*(W_i @ dwb_i) + pwb_i]
    #   with W''_i = diag(pws_i) @ W_i @ diag(dws_i).
    w_fold = [pw_scale[i][:, None] * w_pc[i] * dw_scale[i][None, :] for i in range(3)]
    w_cat = jnp.concatenate(w_fold, axis=1).astype(jnp.bfloat16)      # (P, 3*C)
    w4 = (pw_scale[3][:, None] * w_pc[3]).astype(jnp.float32)         # (P, C)
    bias = sum(pw_scale[i] * (w_pc[i] @ dw_shift[i]) + pw_shift[i] for i in range(3))
    bias = (bias + pw_shift[3]).reshape(C_out, 1).astype(jnp.float32)  # (P, 1)

    x = jax.random.normal(nxt(), (B, C_in, H, W), jnp.float32)   # NCHW, like PyTorch

    out = pyramid_fc_pallas(x, mt_stk, w_cat, w4, bias)
    out = jax.block_until_ready(out)

    ref = reference(x, dw_w, dw_scale, dw_shift, w_pc, pw_scale, pw_shift)
    # bf16 MXU inputs (per the perf review) -> validate against the f32 reference
    # at a bf16-appropriate tolerance.
    np.testing.assert_allclose(np.asarray(out), np.asarray(ref), rtol=5e-3, atol=5e-3)

    print("KERNEL_OK")
</pallas_src>

<mosaic_0001>
module attributes {stable_mosaic.version = 11 : i64} {
  func.func @pyramid_fc_kernel(%arg0: i32, %arg1: i32, %arg2: memref<1x8x256xbf16, #tpu.memory_space<vmem>>, %arg3: memref<3x256x128xbf16, #tpu.memory_space<vmem>>, %arg4: memref<16x24xbf16, #tpu.memory_space<vmem>>, %arg5: memref<16x8xf32, #tpu.memory_space<vmem>>, %arg6: memref<16x1xf32, #tpu.memory_space<vmem>>, %arg7: memref<1x16x128xf32, #tpu.memory_space<vmem>>) attributes {dimension_semantics = [#tpu.dimension_semantics<parallel>, #tpu.dimension_semantics<parallel>], iteration_bounds = array<i64: 2, 2>, scalar_prefetch = 0 : i64, scratch_operands = 0 : i64, tpu.core_type = #tpu.core_type<tc>, window_params = [{transform_indices = @transform_0, window_bounds = array<i64: 1, 8, 256>}, {transform_indices = @transform_1, window_bounds = array<i64: 3, 256, 128>}, {pipeline_mode = #tpu.pipeline_mode<synchronous>, transform_indices = @transform_2, window_bounds = array<i64: 16, 24>}, {pipeline_mode = #tpu.pipeline_mode<synchronous>, transform_indices = @transform_3, window_bounds = array<i64: 16, 8>}, {pipeline_mode = #tpu.pipeline_mode<synchronous>, transform_indices = @transform_4, window_bounds = array<i64: 16, 1>}, {transform_indices = @transform_5, window_bounds = array<i64: 1, 16, 128>}]} {
    %c0 = arith.constant 0 : index
    %c0_0 = arith.constant 0 : index
    %c0_1 = arith.constant 0 : index
    %0 = vector.load %arg2[%c0, %c0_0, %c0_1] : memref<1x8x256xbf16, #tpu.memory_space<vmem>>, vector<1x8x256xbf16>
    %1 = vector.shape_cast %0 : vector<1x8x256xbf16> to vector<8x256xbf16>
    %c0_2 = arith.constant 0 : index
    %c0_3 = arith.constant 0 : index
    %c0_4 = arith.constant 0 : index
    %2 = vector.load %arg3[%c0_2, %c0_3, %c0_4] : memref<3x256x128xbf16, #tpu.memory_space<vmem>>, vector<1x256x128xbf16>
    %3 = vector.shape_cast %2 : vector<1x256x128xbf16> to vector<256x128xbf16>
    %cst = arith.constant dense<0.000000e+00> : vector<8x128xf32>
    %4 = tpu.matmul %1, %3, %cst {dimension_numbers = #tpu.dot_dimension_numbers<[1], [0], [0], [1], [0, 0, 1, 1], [], []>} : vector<8x256xbf16>, vector<256x128xbf16>, vector<8x128xf32> -> vector<8x128xf32>
    %c1 = arith.constant 1 : index
    %c0_5 = arith.constant 0 : index
    %c0_6 = arith.constant 0 : index
    %5 = vector.load %arg3[%c1, %c0_5, %c0_6] : memref<3x256x128xbf16, #tpu.memory_space<vmem>>, vector<1x256x128xbf16>
    %6 = vector.shape_cast %5 : vector<1x256x128xbf16> to vector<256x128xbf16>
    %cst_7 = arith.constant dense<0.000000e+00> : vector<8x128xf32>
    %7 = tpu.matmul %1, %6, %cst_7 {dimension_numbers = #tpu.dot_dimension_numbers<[1], [0], [0], [1], [0, 0, 1, 1], [], []>} : vector<8x256xbf16>, vector<256x128xbf16>, vector<8x128xf32> -> vector<8x128xf32>
    %c2 = arith.constant 2 : index
    %c0_8 = arith.constant 0 : index
    %c0_9 = arith.constant 0 : index
    %8 = vector.load %arg3[%c2, %c0_8, %c0_9] : memref<3x256x128xbf16, #tpu.memory_space<vmem>>, vector<1x256x128xbf16>
    %9 = vector.shape_cast %8 : vector<1x256x128xbf16> to vector<256x128xbf16>
    %cst_10 = arith.constant dense<0.000000e+00> : vector<8x128xf32>
    %10 = tpu.matmul %1, %9, %cst_10 {dimension_numbers = #tpu.dot_dimension_numbers<[1], [0], [0], [1], [0, 0, 1, 1], [], []>} : vector<8x256xbf16>, vector<256x128xbf16>, vector<8x128xf32> -> vector<8x128xf32>
    %11 = tpu.concatenate %4, %7, %10 in 0 : vector<8x128xf32>, vector<8x128xf32>, vector<8x128xf32> -> vector<24x128xf32>
    %12 = arith.truncf %11 : vector<24x128xf32> to vector<24x128xbf16>
    %c0_11 = arith.constant 0 : index
    %c0_12 = arith.constant 0 : index
    %13 = vector.load %arg4[%c0_11, %c0_12] : memref<16x24xbf16, #tpu.memory_space<vmem>>, vector<16x24xbf16>
    %cst_13 = arith.constant dense<0.000000e+00> : vector<16x128xf32>
    %14 = tpu.matmul %13, %12, %cst_13 {dimension_numbers = #tpu.dot_dimension_numbers<[1], [0], [0], [1], [0, 0, 1, 1], [], []>} : vector<16x24xbf16>, vector<24x128xbf16>, vector<16x128xf32> -> vector<16x128xf32>
    %15 = arith.extf %1 : vector<8x256xbf16> to vector<8x256xf32>
    %cst_14 = arith.constant dense<0.000000e+00> : vector<8xf32>
    %16 = vector.multi_reduction <add>, %15, %cst_14 [1] : vector<8x256xf32> to vector<8xf32>
    %17 = vector.shape_cast %16 : vector<8xf32> to vector<8x1xf32>
    %cst_15 = arith.constant 2.560000e+02 : f32
    %18 = vector.broadcast %cst_15 : f32 to vector<8x1xf32>
    %19 = arith.divf %17, %18 : vector<8x1xf32>
    %c0_16 = arith.constant 0 : index
    %c0_17 = arith.constant 0 : index
    %20 = vector.load %arg5[%c0_16, %c0_17] : memref<16x8xf32, #tpu.memory_space<vmem>>, vector<16x8xf32>
    %cst_18 = arith.constant dense<0.000000e+00> : vector<16x1xf32>
    %21 = tpu.matmul %20, %19, %cst_18 {dimension_numbers = #tpu.dot_dimension_numbers<[1], [0], [0], [1], [0, 0, 1, 1], [], []>} : vector<16x8xf32>, vector<8x1xf32>, vector<16x1xf32> -> vector<16x1xf32>
    %22 = vector.broadcast %21 : vector<16x1xf32> to vector<16x128xf32>
    %23 = arith.addf %14, %22 : vector<16x128xf32>
    %c0_19 = arith.constant 0 : index
    %c0_20 = arith.constant 0 : index
    %24 = vector.load %arg6[%c0_19, %c0_20] : memref<16x1xf32, #tpu.memory_space<vmem>>, vector<16x1xf32>
    %25 = vector.broadcast %24 : vector<16x1xf32> to vector<16x128xf32>
    %26 = arith.addf %23, %25 : vector<16x128xf32>
    %cst_21 = arith.constant 5.000000e-01 : f32
    %27 = vector.broadcast %cst_21 : f32 to vector<16x128xf32>
    %28 = arith.mulf %27, %26 : vector<16x128xf32>
    %cst_22 = arith.constant 0.707106769 : f32
    %29 = vector.broadcast %cst_22 : f32 to vector<16x128xf32>
    %30 = arith.mulf %26, %29 : vector<16x128xf32>
    %31 = math.erf %30 : vector<16x128xf32>
    %cst_23 = arith.constant 1.000000e+00 : f32
    %32 = vector.broadcast %cst_23 : f32 to vector<16x128xf32>
    %33 = arith.addf %32, %31 : vector<16x128xf32>
    %34 = arith.mulf %28, %33 : vector<16x128xf32>
    %c0_24 = arith.constant 0 : index
    %c0_25 = arith.constant 0 : index
    %c0_26 = arith.constant 0 : index
    %35 = vector.load %arg7[%c0_24, %c0_25, %c0_26] : memref<1x16x128xf32, #tpu.memory_space<vmem>>, vector<1x16x128xf32>
    %36 = vector.shape_cast %35 : vector<1x16x128xf32> to vector<16x128xf32>
    %37 = vector.shape_cast %34 : vector<16x128xf32> to vector<1x16x128xf32>
    tpu.vector_store %arg7[%c0_24, %c0_25, %c0_26], %37 {strides = array<i32>} : memref<1x16x128xf32, #tpu.memory_space<vmem>>, vector<1x16x128xf32>,
    return
  }
  func.func @transform_0(%arg0: i32, %arg1: i32) -> (i32, i32, i32) {
    %c0_i32 = arith.constant 0 : i32
    %c0_i32_0 = arith.constant 0 : i32
    %c0_i32_1 = arith.constant 0 : i32
    return %arg0, %c0_i32, %c0_i32_0 : i32, i32, i32
  }
  func.func @transform_1(%arg0: i32, %arg1: i32) -> (i32, i32, i32) {
    %c0_i32 = arith.constant 0 : i32
    %c0_i32_0 = arith.constant 0 : i32
    %c0_i32_1 = arith.constant 0 : i32
    return %c0_i32, %c0_i32_0, %arg1 : i32, i32, i32
  }
  func.func @transform_2(%arg0: i32, %arg1: i32) -> (i32, i32) {
    %c0_i32 = arith.constant 0 : i32
    %c0_i32_0 = arith.constant 0 : i32
    %c0_i32_1 = arith.constant 0 : i32
    return %c0_i32, %c0_i32_0 : i32, i32
  }
  func.func @transform_3(%arg0: i32, %arg1: i32) -> (i32, i32) {
    %c0_i32 = arith.constant 0 : i32
    %c0_i32_0 = arith.constant 0 : i32
    %c0_i32_1 = arith.constant 0 : i32
    return %c0_i32, %c0_i32_0 : i32, i32
  }
  func.func @transform_4(%arg0: i32, %arg1: i32) -> (i32, i32) {
    %c0_i32 = arith.constant 0 : i32
    %c0_i32_0 = arith.constant 0 : i32
    %c0_i32_1 = arith.constant 0 : i32
    return %c0_i32, %c0_i32_0 : i32, i32
  }
  func.func @transform_5(%arg0: i32, %arg1: i32) -> (i32, i32, i32) {
    %c0_i32 = arith.constant 0 : i32
    %c0_i32_0 = arith.constant 0 : i32
    return %arg0, %c0_i32, %arg1 : i32, i32, i32
  }
}

</mosaic_0001>

<llo_original>
// kernel: tpu_custom_call.1
$region0: #{tpu_custom_call.1}
  #allocation0 [shape = 'u32[]', space=smem, size = 0x4, offset = 0x4, fixed_abs, tag = 'smem constant byte address 0x4 - core index']
  #allocation1 [shape = 'u32[72,128]{1,0:T(1,128)}', space=vmem, size = 0x9000, scoped, tag = 'internal scratch']
  %s0 = inlined_call_operand.vmem [shape: bf16[2,8,256], index: 0, kind: input, shape index: {}]
  %s1 = inlined_call_operand.hbm [shape: bf16[3,256,256], index: 1, kind: input, shape index: {}]
  %s2 = inlined_call_operand.vmem [shape: bf16[16,24], index: 2, kind: input, shape index: {}]
  %s3 = inlined_call_operand.vmem [shape: f32[16,8], index: 3, kind: input, shape index: {}]
  %s4 = inlined_call_operand.vmem [shape: f32[16,1], index: 4, kind: input, shape index: {}]
  %s5 = inlined_call_operand.hbm [shape: f32[2,16,256], index: 5, kind: output, shape index: {}]
  %s6 = sld [smem:[#allocation0]]
  $region57: #{tpu_custom_call.1} parent=0
    _
  %s8 = ssub.s32 1, %s6
  %s9 = scalar_select 0, %s8, %s6
  $region1: #{tpu_custom_call.1} parent=0
    #allocation2 [shape = 'u8[393216]{0}', space=vmem, size = 0x60000, scoped, tag = 'input window, operand 1']
    #allocation3 [shape = 's32[2]{0}', space=sflag, size = 0x8, scoped, tag = 'scoped memory for tpu_custom_call.1']
    #allocation4 [shape = 's32[2]{0}', space=sflag, size = 0x8, scoped, tag = 'scoped memory for tpu_custom_call.1']
    #allocation5 [shape = 'u8[16384]{0}', space=vmem, size = 0x4000, scoped, tag = 'output window, operand 0']
    %10 = vsyncpa [#allocation3], 0
    %s11 = scalar_lea.sflag [#allocation3], 1
    %12 = vsyncpa %s11, 0
    %13 = vsyncpa [#allocation4], 0
    %s14 = scalar_lea.sflag [#allocation4], 1
    %15 = vsyncpa %s14, 0
    loop: start=0, step=1, limit=6
    $region2: #{tpu_custom_call.1} parent=1 // loop_pre_header
      _
    $region3: #{tpu_custom_call.1} parent=1 // loop_header
      %s17 = sphi 0, %s21
      %p18 = scmp.ge.s32.totalorder %s17, 6
      %s24 = sphi 0, %s36
      %s25 = sphi 0, %s32
      %s26 = sphi 0, %s24
      %s27 = sphi 0, %s25
      %s28 = sphi 0, %s26
      %s29 = sphi 0, %s27
      %s39 = sphi 0, %s41
      %s42 = sphi 0, %s39
      %s43 = sphi 0, %s42
      %s59 = sphi 0, %s43
      %s65 = sphi 0, %s67
      %s68 = sphi 0, %s65
      %s69 = sphi 0, %s68
      %s85 = sphi 0, %s69
      %s89 = sphi 0, %s89
      %s91 = sphi 0, %s89
      %s92 = sphi 0, %s91
      %s106 = sphi 0, %s92
      %s110 = sphi 0, %s110
      %s112 = sphi 0, %s110
      %s113 = sphi 0, %s112
      %s127 = sphi 0, %s113
      %s131 = sphi 0, %s131
      %s133 = sphi 0, %s131
      %s134 = sphi 0, %s133
      %s148 = sphi 0, %s134
      %s156 = sphi 0, %s158
      %s159 = sphi 0, %s156
      %s160 = sphi 0, %s159
      %s176 = sphi 0, %s160
    $region4: #{tpu_custom_call.1} parent=1 // loop_header_branch
      %20 = sbr.rel (%p18) target = $region8
    $region5: #{tpu_custom_call.1} parent=1 // loop_body
      %s22 = ssub.s32 %s17, 1
      %s23 = ssub.s32 %s17, 2
      %s30 = sadd.s32 1, %s25
      %p31 = scmp.ge.s32.totalorder %s30, 2
      %s32 = scalar_select %p31, 0, %s30
      %s33 = sadd.s32 1, %s24
      %s34 = scalar_select %p31, %s33, %s24
      %p35 = scmp.ge.s32.totalorder %s34, 2
      %s36 = scalar_select %p35, 0, %s34
      %s37 = ssub.s32 %s24, %s36
      %p38 = scmp.eq.s32.totalorder %s37, 0
      %s40 = sadd.s32 %s39, 1
      %s41 = scalar_select %p38, %s39, %s40
      %p44 = pneg %p38
      %p45 = scmp.eq.s32.totalorder %s17, 3
      %p46 = por %p44, %p45
      %p47 = scmp.ne.s32.totalorder %s39, %s42
      %p48 = scmp.eq.s32.totalorder %s17, 0
      %p49 = por %p47, %p48
      %p50 = scmp.ne.s32.totalorder %s39, %s42
      %p51 = scmp.eq.s32.totalorder %s22, 3
      %p52 = por %p50, %p51
      %p53 = scmp.ne.s32.totalorder %s42, %s43
      %p54 = scmp.eq.s32.totalorder %s22, 0
      %p55 = por %p53, %p54
      %p56 = scmp.ne.s32.totalorder %s42, %s43
      %p57 = scmp.eq.s32.totalorder %s23, 3
      %p58 = por %p56, %p57
      %p60 = scmp.ne.s32.totalorder %s43, %s59
      %p61 = scmp.eq.s32.totalorder %s23, 0
      %p62 = por %p60, %p61
      %s63 = ssub.s32 %s25, %s32
      %p64 = scmp.eq.s32.totalorder %s63, 0
      %s66 = sadd.s32 %s65, 1
      %s67 = scalar_select %p64, %s65, %s66
      %p70 = pneg %p64
      %p71 = scmp.eq.s32.totalorder %s17, 3
      %p72 = por %p70, %p71
      %p73 = scmp.ne.s32.totalorder %s65, %s68
      %p74 = scmp.eq.s32.totalorder %s17, 0
      %p75 = por %p73, %p74
      %p76 = scmp.ne.s32.totalorder %s65, %s68
      %p77 = scmp.eq.s32.totalorder %s22, 3
      %p78 = por %p76, %p77
      %p79 = scmp.ne.s32.totalorder %s68, %s69
      %p80 = scmp.eq.s32.totalorder %s22, 0
      %p81 = por %p79, %p80
      %p82 = scmp.ne.s32.totalorder %s68, %s69
      %p83 = scmp.eq.s32.totalorder %s23, 3
      %p84 = por %p82, %p83
      %p86 = scmp.ne.s32.totalorder %s69, %s85
      %p87 = scmp.eq.s32.totalorder %s23, 0
      %p88 = por %p86, %p87
      %s90 = sadd.s32 %s89, 1
      %p93 = scmp.eq.s32.totalorder %s17, 3
      %p94 = scmp.ne.s32.totalorder %s89, %s91
      %p95 = scmp.eq.s32.totalorder %s17, 0
      %p96 = por %p94, %p95
      %p97 = scmp.ne.s32.totalorder %s89, %s91
      %p98 = scmp.eq.s32.totalorder %s22, 3
      %p99 = por %p97, %p98
      %p100 = scmp.ne.s32.totalorder %s91, %s92
      %p101 = scmp.eq.s32.totalorder %s22, 0
      %p102 = por %p100, %p101
      %p103 = scmp.ne.s32.totalorder %s91, %s92
      %p104 = scmp.eq.s32.totalorder %s23, 3
      %p105 = por %p103, %p104
      %p107 = scmp.ne.s32.totalorder %s92, %s106
      %p108 = scmp.eq.s32.totalorder %s23, 0
      %p109 = por %p107, %p108
      %s111 = sadd.s32 %s110, 1
      %p114 = scmp.eq.s32.totalorder %s17, 3
      %p115 = scmp.ne.s32.totalorder %s110, %s112
      %p116 = scmp.eq.s32.totalorder %s17, 0
      %p117 = por %p115, %p116
      %p118 = scmp.ne.s32.totalorder %s110, %s112
      %p119 = scmp.eq.s32.totalorder %s22, 3
      %p120 = por %p118, %p119
      %p121 = scmp.ne.s32.totalorder %s112, %s113
      %p122 = scmp.eq.s32.totalorder %s22, 0
      %p123 = por %p121, %p122
      %p124 = scmp.ne.s32.totalorder %s112, %s113
      %p125 = scmp.eq.s32.totalorder %s23, 3
      %p126 = por %p124, %p125
      %p128 = scmp.ne.s32.totalorder %s113, %s127
      %p129 = scmp.eq.s32.totalorder %s23, 0
      %p130 = por %p128, %p129
      %s132 = sadd.s32 %s131, 1
      %p135 = scmp.eq.s32.totalorder %s17, 3
      %p136 = scmp.ne.s32.totalorder %s131, %s133
      %p137 = scmp.eq.s32.totalorder %s17, 0
      %p138 = por %p136, %p137
      %p139 = scmp.ne.s32.totalorder %s131, %s133
      %p140 = scmp.eq.s32.totalorder %s22, 3
      %p141 = por %p139, %p140
      %p142 = scmp.ne.s32.totalorder %s133, %s134
      %p143 = scmp.eq.s32.totalorder %s22, 0
      %p144 = por %p142, %p143
      %p145 = scmp.ne.s32.totalorder %s133, %s134
      %p146 = scmp.eq.s32.totalorder %s23, 3
      %p147 = por %p145, %p146
      %p149 = scmp.ne.s32.totalorder %s134, %s148
      %p150 = scmp.eq.s32.totalorder %s23, 0
      %p151 = por %p149, %p150
      %s152 = ssub.s32 %s24, %s36
      %s153 = ssub.s32 %s25, %s32
      %s154 = sor.u32 %s152, %s153
      %p155 = scmp.eq.s32.totalorder %s154, 0
      %s157 = sadd.s32 %s156, 1
      %s158 = scalar_select %p155, %s156, %s157
      %p161 = pneg %p155
      %p162 = scmp.eq.s32.totalorder %s17, 3
      %p163 = por %p161, %p162
      %p164 = scmp.ne.s32.totalorder %s156, %s159
      %p165 = scmp.eq.s32.totalorder %s17, 0
      %p166 = por %p164, %p165
      %p167 = scmp.ne.s32.totalorder %s156, %s159
      %p168 = scmp.eq.s32.totalorder %s22, 3
      %p169 = por %p167, %p168
      %p170 = scmp.ne.s32.totalorder %s159, %s160
      %p171 = scmp.eq.s32.totalorder %s22, 0
      %p172 = por %p170, %p171
      %p173 = scmp.ne.s32.totalorder %s159, %s160
      %p174 = scmp.eq.s32.totalorder %s23, 3
      %p175 = por %p173, %p174
      %p177 = scmp.ne.s32.totalorder %s160, %s176
      %p178 = scmp.eq.s32.totalorder %s23, 0
      %p179 = por %p177, %p178
      %p180 = scmp.le.s32.totalorder 1, %s17
      %p181 = scmp.lt.s32.totalorder %s17, 5
      %p182 = pnand %p180, %p181
      %p183 = pneg %p182
      // Predicated region
      $region9: #{tpu_custom_call.1} parent=5 // pred_check
        _
      $region10: #{tpu_custom_call.1} parent=5 // pred_check_branch
        %185 = sbr.rel (%p182) target = $region12
      $region11: #{tpu_custom_call.1} parent=5 // pred_region
        %s186 = ssub.s32 %s17, 1
        // Predicated region
        $region13: #{tpu_custom_call.1} parent=11 // pred_check
          %p187 = pneg %p102
        $region14: #{tpu_custom_call.1} parent=11 // pred_check_branch
          %189 = sbr.rel (%p187) target = $region16
        $region15: #{tpu_custom_call.1} parent=11 // pred_region
          _
        $region16: #{tpu_custom_call.1} parent=11 // pred_fallthru
          _
        // Predicated region
        $region17: #{tpu_custom_call.1} parent=11 // pred_check
          %p190 = pneg %p123
        $region18: #{tpu_custom_call.1} parent=11 // pred_check_branch
          %192 = sbr.rel (%p190) target = $region20
        $region19: #{tpu_custom_call.1} parent=11 // pred_region
          _
        $region20: #{tpu_custom_call.1} parent=11 // pred_fallthru
          _
        // Predicated region
        $region21: #{tpu_custom_call.1} parent=11 // pred_check
          %p193 = pneg %p144
        $region22: #{tpu_custom_call.1} parent=11 // pred_check_branch
          %195 = sbr.rel (%p193) target = $region24
        $region23: #{tpu_custom_call.1} parent=11 // pred_region
          _
        $region24: #{tpu_custom_call.1} parent=11 // pred_fallthru
          _
      $region12: #{tpu_custom_call.1} parent=5 // pred_fallthru
        _
      %p196 = scmp.lt.s32.totalorder %s17, 4
      // Predicated region
      $region25: #{tpu_custom_call.1} parent=5 // pred_check
        %p197 = pneg %p196
      $region26: #{tpu_custom_call.1} parent=5 // pred_check_branch
        %199 = sbr.rel (%p197) target = $region28
      $region27: #{tpu_custom_call.1} parent=5 // pred_region
        // Predicated region
        $region29: #{tpu_custom_call.1} parent=27 // pred_check
          %p200 = pneg %p49
        $region30: #{tpu_custom_call.1} parent=27 // pred_check_branch
          %202 = sbr.rel (%p200) target = $region32
        $region31: #{tpu_custom_call.1} parent=27 // pred_region
          %p203 = scmp.lt.s32.totalorder %s24, 1
          %s204 = scalar_select %p203, %s24, 1
          %s205 = smul.addr %s204, 2
          %s206 = smul.addr %s205, 4
          %s207 = scalar_lea.vmem %s0, %s206
        $region32: #{tpu_custom_call.1} parent=27 // pred_fallthru
          _
        // Predicated region
        $region33: #{tpu_custom_call.1} parent=27 // pred_check
          %p208 = pneg %p75
        $region34: #{tpu_custom_call.1} parent=27 // pred_check_branch
          %210 = sbr.rel (%p208) target = $region36
        $region35: #{tpu_custom_call.1} parent=27 // pred_region
          %s211 = sand.u32 %s65, 1
          %s212 = scalar_lea.sflag [#allocation3], %s211
          %s213 = sand.u32 %s65, 1
          %s214 = smul.addr %s213, 384
          %s215 = scalar_lea.vmem [#allocation2], %s214
          %217 = vsyncadd %s212, 0
          %s218 = smul.addr %s25, 4
          %s219 = scalar_lea.hbm %s1, %s218
          %s220 = sshll.u32 %s219, 4
          %s221 = int_to_ptr.hbm [resolvable:$true] %s220
          %s222 = sshll.u32 %s215, 4
          %s223 = int_to_ptr.vmem [resolvable:$true] %s222
          %228 = dma.hbm_to_vmem [thread:$0]  %s221, 6144, %s223, %s212, 128, 64, 4
        $region36: #{tpu_custom_call.1} parent=27 // pred_fallthru
          _
      $region28: #{tpu_custom_call.1} parent=5 // pred_fallthru
        _
      %p229 = scmp.le.s32.totalorder 1, %s17
      %p230 = scmp.lt.s32.totalorder %s17, 5
      %p231 = pnand %p229, %p230
      %p232 = pneg %p231
      // Predicated region
      $region37: #{tpu_custom_call.1} parent=5 // pred_check
        _
      $region38: #{tpu_custom_call.1} parent=5 // pred_check_branch
        %234 = sbr.rel (%p231) target = $region40
      $region39: #{tpu_custom_call.1} parent=5 // pred_region
        %s235 = ssub.s32 %s17, 1
        %s236 = sand.u32 %s68, 1
        %s237 = scalar_lea.sflag [#allocation3], %s236
        %s238 = sand.u32 %s68, 1
        %s239 = smul.addr %s238, 384
        %s240 = scalar_lea.vmem [#allocation2], %s239
        // Predicated region
        $region41: #{tpu_custom_call.1} parent=39 // pred_check
          %p241 = pneg %p81
        $region42: #{tpu_custom_call.1} parent=39 // pred_check_branch
          %243 = sbr.rel (%p241) target = $region44
        $region43: #{tpu_custom_call.1} parent=39 // pred_region
          %245 = dma.done %s237, 6144
        $region44: #{tpu_custom_call.1} parent=39 // pred_fallthru
          _
        %p246 = scmp.lt.s32.totalorder %s26, 1
        %s247 = scalar_select %p246, %s26, 1
        %s248 = smul.addr %s247, 2
        %s249 = smul.addr %s248, 4
        %s250 = scalar_lea.vmem %s0, %s249
        %p251 = pneg %p55
        %p252 = pneg %p52
        %s253 = sand.u32 %s68, 1
        %s254 = scalar_lea.sflag [#allocation3], %s253
        %s255 = sand.u32 %s68, 1
        %s256 = smul.addr %s255, 384
        %s257 = scalar_lea.vmem [#allocation2], %s256
        %p258 = pneg %p81
        %p259 = pneg %p78
        %p260 = pneg %p102
        %p261 = pneg %p99
        %p262 = pneg %p123
        %p263 = pneg %p120
        %p264 = pneg %p144
        %p265 = pneg %p141
        %p266 = pneg %p172
        %p267 = pneg %p169
        %s268 = sand.u32 %s159, 1
        %s269 = scalar_lea.sflag [#allocation4], %s268
        %s270 = sand.u32 %s159, 1
        %s271 = smul.addr %s270, 16
        %s272 = scalar_lea.vmem [#allocation5], %s271
        %p273 = scmp.lt.s32.totalorder %s26, 1
        %s274 = scalar_select %p273, %s26, 1
        %s275 = smul.addr %s274, 2
        %s276 = smul.addr %s275, 4
        %s277 = scalar_lea.vmem %s0, %s276
        %v279 = vld [vmem:[%s277] sm:$0xff]
        %v280 = vld [vmem:[%s240] sm:$0xf]
        %v281 = vld [vmem:[%s240 + $0x4] sm:$0xf]
        %v282 = vld [vmem:[%s240 + $0x8] sm:$0xf]
        %v283 = vld [vmem:[%s240 + $0xc] sm:$0xf]
        %v284 = vld [vmem:[%s240 + $0x10] sm:$0xf]
        %v285 = vld [vmem:[%s240 + $0x14] sm:$0xf]
        %v286 = vld [vmem:[%s240 + $0x18] sm:$0xf]
        %v287 = vld [vmem:[%s240 + $0x1c] sm:$0xf]
        %v288 = vld [vmem:[%s240 + $0x20] sm:$0xf]
        %v289 = vld [vmem:[%s240 + $0x24] sm:$0xf]
        %v290 = vld [vmem:[%s240 + $0x28] sm:$0xf]
        %v291 = vld [vmem:[%s240 + $0x2c] sm:$0xf]
        %v292 = vld [vmem:[%s240 + $0x30] sm:$0xf]
        %v293 = vld [vmem:[%s240 + $0x34] sm:$0xf]
        %v294 = vld [vmem:[%s240 + $0x38] sm:$0xf]
        %v295 = vld [vmem:[%s240 + $0x3c] sm:$0xf]
        %v296 = vld [vmem:[%s240 + $0x40] sm:$0xf]
        %v297 = vld [vmem:[%s240 + $0x44] sm:$0xf]
        %v298 = vld [vmem:[%s240 + $0x48] sm:$0xf]
        %v299 = vld [vmem:[%s240 + $0x4c] sm:$0xf]
        %v300 = vld [vmem:[%s240 + $0x50] sm:$0xf]
        %v301 = vld [vmem:[%s240 + $0x54] sm:$0xf]
        %v302 = vld [vmem:[%s240 + $0x58] sm:$0xf]
        %v303 = vld [vmem:[%s240 + $0x5c] sm:$0xf]
        %v304 = vld [vmem:[%s240 + $0x60] sm:$0xf]
        %v305 = vld [vmem:[%s240 + $0x64] sm:$0xf]
        %v306 = vld [vmem:[%s240 + $0x68] sm:$0xf]
        %v307 = vld [vmem:[%s240 + $0x6c] sm:$0xf]
        %v308 = vld [vmem:[%s240 + $0x70] sm:$0xf]
        %v309 = vld [vmem:[%s240 + $0x74] sm:$0xf]
        %v310 = vld [vmem:[%s240 + $0x78] sm:$0xf]
        %v311 = vld [vmem:[%s240 + $0x7c] sm:$0xf]
        %v313 = vunpack.c.l.b16 %v279
        %v314 = vunpack.c.h.b16 %v279
        %v315 = vpack.c.b16 %v313, %v313
        %v316 = vpack.c.b16 %v314, %v314
        %v351 = vunpack.c.l.b16 %v280
        %v352 = vunpack.c.l.b16 %v281
        %v353 = vunpack.c.l.b16 %v282
        %v354 = vunpack.c.l.b16 %v283
        %v355 = vunpack.c.l.b16 %v284
        %v356 = vunpack.c.l.b16 %v285
        %v357 = vunpack.c.l.b16 %v286
        %v358 = vunpack.c.l.b16 %v287
        %v359 = vunpack.c.l.b16 %v288
        %v360 = vunpack.c.l.b16 %v289
        %v361 = vunpack.c.l.b16 %v290
        %v362 = vunpack.c.l.b16 %v291
        %v363 = vunpack.c.l.b16 %v292
        %v364 = vunpack.c.l.b16 %v293
        %v365 = vunpack.c.l.b16 %v294
        %v366 = vunpack.c.l.b16 %v295
        %v367 = vunpack.c.l.b16 %v296
        %v368 = vunpack.c.l.b16 %v297
        %v369 = vunpack.c.l.b16 %v298
        %v370 = vunpack.c.l.b16 %v299
        %v371 = vunpack.c.l.b16 %v300
        %v372 = vunpack.c.l.b16 %v301
        %v373 = vunpack.c.l.b16 %v302
        %v374 = vunpack.c.l.b16 %v303
        %v375 = vunpack.c.l.b16 %v304
        %v376 = vunpack.c.l.b16 %v305
        %v377 = vunpack.c.l.b16 %v306
        %v378 = vunpack.c.l.b16 %v307
        %v379 = vunpack.c.l.b16 %v308
        %v380 = vunpack.c.l.b16 %v309
        %v381 = vunpack.c.l.b16 %v310
        %v382 = vunpack.c.l.b16 %v311
        %v383 = vpack.c.b16 %v352, %v351
        %v384 = vpack.c.b16 %v354, %v353
        %v385 = vpack.c.b16 %v356, %v355
        %v386 = vpack.c.b16 %v358, %v357
        %v387 = vpack.c.b16 %v360, %v359
        %v388 = vpack.c.b16 %v362, %v361
        %v389 = vpack.c.b16 %v364, %v363
        %v390 = vpack.c.b16 %v366, %v365
        %v391 = vpack.c.b16 %v368, %v367
        %v392 = vpack.c.b16 %v370, %v369
        %v393 = vpack.c.b16 %v372, %v371
        %v394 = vpack.c.b16 %v374, %v373
        %v395 = vpack.c.b16 %v376, %v375
        %v396 = vpack.c.b16 %v378, %v377
        %v397 = vpack.c.b16 %v380, %v379
        %v398 = vpack.c.b16 %v382, %v381
        %415 = vmatpush.bf16.msra.mxu0 %v390
        %416 = vmatpush.bf16.msra.mxu0 %v389
        %417 = vmatpush.bf16.msra.mxu0 %v388
        %418 = vmatpush.bf16.msra.mxu0 %v387
        %419 = vmatpush.bf16.msra.mxu0 %v386
        %420 = vmatpush.bf16.msra.mxu0 %v385
        %421 = vmatpush.bf16.msra.mxu0 %v384
        %422 = vmatpush.bf16.msra.mxu0 %v383
        %423 = vmatmul.bf16.gmra.mxu0 %v315
        %v424 = vpop.f32.mrf.mxu0
        %v425 = vadd.f32 0.0, %v424
        %v426 = vpop.f32.mrf.mxu0
        %427 = vdwg.mxu0
        %428 = vmatpush.bf16.msra.mxu0 %v398
        %429 = vmatpush.bf16.msra.mxu0 %v397
        %430 = vmatpush.bf16.msra.mxu0 %v396
        %431 = vmatpush.bf16.msra.mxu0 %v395
        %432 = vmatpush.bf16.msra.mxu0 %v394
        %433 = vmatpush.bf16.msra.mxu0 %v393
        %434 = vmatpush.bf16.msra.mxu0 %v392
        %435 = vmatpush.bf16.msra.mxu0 %v391
        %436 = vmatmul.bf16.gmra.mxu0 %v316
        %v437 = vpop.f32.mrf.mxu0
        %v438 = vadd.f32 %v425, %v437
        %v439 = vpop.f32.mrf.mxu0
        %440 = vdwg.mxu0
        %s441 = scalar_lea.vmem %s240, 128 [#allocation2]
        %v442 = vld [vmem:[%s441] sm:$0xf]
        %v443 = vld [vmem:[%s441 + $0x4] sm:$0xf]
        %v444 = vld [vmem:[%s441 + $0x8] sm:$0xf]
        %v445 = vld [vmem:[%s441 + $0xc] sm:$0xf]
        %v446 = vld [vmem:[%s441 + $0x10] sm:$0xf]
        %v447 = vld [vmem:[%s441 + $0x14] sm:$0xf]
        %v448 = vld [vmem:[%s441 + $0x18] sm:$0xf]
        %v449 = vld [vmem:[%s441 + $0x1c] sm:$0xf]
        %v450 = vld [vmem:[%s441 + $0x20] sm:$0xf]
        %v451 = vld [vmem:[%s441 + $0x24] sm:$0xf]
        %v452 = vld [vmem:[%s441 + $0x28] sm:$0xf]
        %v453 = vld [vmem:[%s441 + $0x2c] sm:$0xf]
        %v454 = vld [vmem:[%s441 + $0x30] sm:$0xf]
        %v455 = vld [vmem:[%s441 + $0x34] sm:$0xf]
        %v456 = vld [vmem:[%s441 + $0x38] sm:$0xf]
        %v457 = vld [vmem:[%s441 + $0x3c] sm:$0xf]
        %v458 = vld [vmem:[%s441 + $0x40] sm:$0xf]
        %v459 = vld [vmem:[%s441 + $0x44] sm:$0xf]
        %v460 = vld [vmem:[%s441 + $0x48] sm:$0xf]
        %v461 = vld [vmem:[%s441 + $0x4c] sm:$0xf]
        %v462 = vld [vmem:[%s441 + $0x50] sm:$0xf]
        %v463 = vld [vmem:[%s441 + $0x54] sm:$0xf]
        %v464 = vld [vmem:[%s441 + $0x58] sm:$0xf]
        %v465 = vld [vmem:[%s441 + $0x5c] sm:$0xf]
        %v466 = vld [vmem:[%s441 + $0x60] sm:$0xf]
        %v467 = vld [vmem:[%s441 + $0x64] sm:$0xf]
        %v468 = vld [vmem:[%s441 + $0x68] sm:$0xf]
        %v469 = vld [vmem:[%s441 + $0x6c] sm:$0xf]
        %v470 = vld [vmem:[%s441 + $0x70] sm:$0xf]
        %v471 = vld [vmem:[%s441 + $0x74] sm:$0xf]
        %v472 = vld [vmem:[%s441 + $0x78] sm:$0xf]
        %v473 = vld [vmem:[%s441 + $0x7c] sm:$0xf]
        %v506 = vunpack.c.l.b16 %v442
        %v507 = vunpack.c.l.b16 %v443
        %v508 = vunpack.c.l.b16 %v444
        %v509 = vunpack.c.l.b16 %v445
        %v510 = vunpack.c.l.b16 %v446
        %v511 = vunpack.c.l.b16 %v447
        %v512 = vunpack.c.l.b16 %v448
        %v513 = vunpack.c.l.b16 %v449
        %v514 = vunpack.c.l.b16 %v450
        %v515 = vunpack.c.l.b16 %v451
        %v516 = vunpack.c.l.b16 %v452
        %v517 = vunpack.c.l.b16 %v453
        %v518 = vunpack.c.l.b16 %v454
        %v519 = vunpack.c.l.b16 %v455
        %v520 = vunpack.c.l.b16 %v456
        %v521 = vunpack.c.l.b16 %v457
        %v522 = vunpack.c.l.b16 %v458
        %v523 = vunpack.c.l.b16 %v459
        %v524 = vunpack.c.l.b16 %v460
        %v525 = vunpack.c.l.b16 %v461
        %v526 = vunpack.c.l.b16 %v462
        %v527 = vunpack.c.l.b16 %v463
        %v528 = vunpack.c.l.b16 %v464
        %v529 = vunpack.c.l.b16 %v465
        %v530 = vunpack.c.l.b16 %v466
        %v531 = vunpack.c.l.b16 %v467
        %v532 = vunpack.c.l.b16 %v468
        %v533 = vunpack.c.l.b16 %v469
        %v534 = vunpack.c.l.b16 %v470
        %v535 = vunpack.c.l.b16 %v471
        %v536 = vunpack.c.l.b16 %v472
        %v537 = vunpack.c.l.b16 %v473
        %v538 = vpack.c.b16 %v507, %v506
        %v539 = vpack.c.b16 %v509, %v508
        %v540 = vpack.c.b16 %v511, %v510
        %v541 = vpack.c.b16 %v513, %v512
        %v542 = vpack.c.b16 %v515, %v514
        %v543 = vpack.c.b16 %v517, %v516
        %v544 = vpack.c.b16 %v519, %v518
        %v545 = vpack.c.b16 %v521, %v520
        %v546 = vpack.c.b16 %v523, %v522
        %v547 = vpack.c.b16 %v525, %v524
        %v548 = vpack.c.b16 %v527, %v526
        %v549 = vpack.c.b16 %v529, %v528
        %v550 = vpack.c.b16 %v531, %v530
        %v551 = vpack.c.b16 %v533, %v532
        %v552 = vpack.c.b16 %v535, %v534
        %v553 = vpack.c.b16 %v537, %v536
        %570 = vmatpush.bf16.msra.mxu0 %v545
        %571 = vmatpush.bf16.msra.mxu0 %v544
        %572 = vmatpush.bf16.msra.mxu0 %v543
        %573 = vmatpush.bf16.msra.mxu0 %v542
        %574 = vmatpush.bf16.msra.mxu0 %v541
        %575 = vmatpush.bf16.msra.mxu0 %v540
        %576 = vmatpush.bf16.msra.mxu0 %v539
        %577 = vmatpush.bf16.msra.mxu0 %v538
        %578 = vmatmul.bf16.gmra.mxu0 %v315
        %v579 = vpop.f32.mrf.mxu0
        %v580 = vadd.f32 0.0, %v579
        %v581 = vpop.f32.mrf.mxu0
        %582 = vdwg.mxu0
        %583 = vmatpush.bf16.msra.mxu0 %v553
        %584 = vmatpush.bf16.msra.mxu0 %v552
        %585 = vmatpush.bf16.msra.mxu0 %v551
        %586 = vmatpush.bf16.msra.mxu0 %v550
        %587 = vmatpush.bf16.msra.mxu0 %v549
        %588 = vmatpush.bf16.msra.mxu0 %v548
        %589 = vmatpush.bf16.msra.mxu0 %v547
        %590 = vmatpush.bf16.msra.mxu0 %v546
        %591 = vmatmul.bf16.gmra.mxu0 %v316
        %v592 = vpop.f32.mrf.mxu0
        %v593 = vadd.f32 %v580, %v592
        %v594 = vpop.f32.mrf.mxu0
        %595 = vdwg.mxu0
        %s596 = scalar_lea.vmem %s240, 256 [#allocation2]
        %v597 = vld [vmem:[%s596] sm:$0xf]
        %v598 = vld [vmem:[%s596 + $0x4] sm:$0xf]
        %v599 = vld [vmem:[%s596 + $0x8] sm:$0xf]
        %v600 = vld [vmem:[%s596 + $0xc] sm:$0xf]
        %v601 = vld [vmem:[%s596 + $0x10] sm:$0xf]
        %v602 = vld [vmem:[%s596 + $0x14] sm:$0xf]
        %v603 = vld [vmem:[%s596 + $0x18] sm:$0xf]
        %v604 = vld [vmem:[%s596 + $0x1c] sm:$0xf]
        %v605 = vld [vmem:[%s596 + $0x20] sm:$0xf]
        %v606 = vld [vmem:[%s596 + $0x24] sm:$0xf]
        %v607 = vld [vmem:[%s596 + $0x28] sm:$0xf]
        %v608 = vld [vmem:[%s596 + $0x2c] sm:$0xf]
        %v609 = vld [vmem:[%s596 + $0x30] sm:$0xf]
        %v610 = vld [vmem:[%s596 + $0x34] sm:$0xf]
        %v611 = vld [vmem:[%s596 + $0x38] sm:$0xf]
        %v612 = vld [vmem:[%s596 + $0x3c] sm:$0xf]
        %v613 = vld [vmem:[%s596 + $0x40] sm:$0xf]
        %v614 = vld [vmem:[%s596 + $0x44] sm:$0xf]
        %v615 = vld [vmem:[%s596 + $0x48] sm:$0xf]
        %v616 = vld [vmem:[%s596 + $0x4c] sm:$0xf]
        %v617 = vld [vmem:[%s596 + $0x50] sm:$0xf]
        %v618 = vld [vmem:[%s596 + $0x54] sm:$0xf]
        %v619 = vld [vmem:[%s596 + $0x58] sm:$0xf]
        %v620 = vld [vmem:[%s596 + $0x5c] sm:$0xf]
        %v621 = vld [vmem:[%s596 + $0x60] sm:$0xf]
        %v622 = vld [vmem:[%s596 + $0x64] sm:$0xf]
        %v623 = vld [vmem:[%s596 + $0x68] sm:$0xf]
        %v624 = vld [vmem:[%s596 + $0x6c] sm:$0xf]
        %v625 = vld [vmem:[%s596 + $0x70] sm:$0xf]
        %v626 = vld [vmem:[%s596 + $0x74] sm:$0xf]
        %v627 = vld [vmem:[%s596 + $0x78] sm:$0xf]
        %v628 = vld [vmem:[%s596 + $0x7c] sm:$0xf]
        %v661 = vunpack.c.l.b16 %v597
        %v662 = vunpack.c.l.b16 %v598
        %v663 = vunpack.c.l.b16 %v599
        %v664 = vunpack.c.l.b16 %v600
        %v665 = vunpack.c.l.b16 %v601
        %v666 = vunpack.c.l.b16 %v602
        %v667 = vunpack.c.l.b16 %v603
        %v668 = vunpack.c.l.b16 %v604
        %v669 = vunpack.c.l.b16 %v605
        %v670 = vunpack.c.l.b16 %v606
        %v671 = vunpack.c.l.b16 %v607
        %v672 = vunpack.c.l.b16 %v608
        %v673 = vunpack.c.l.b16 %v609
        %v674 = vunpack.c.l.b16 %v610
        %v675 = vunpack.c.l.b16 %v611
        %v676 = vunpack.c.l.b16 %v612
        %v677 = vunpack.c.l.b16 %v613
        %v678 = vunpack.c.l.b16 %v614
        %v679 = vunpack.c.l.b16 %v615
        %v680 = vunpack.c.l.b16 %v616
        %v681 = vunpack.c.l.b16 %v617
        %v682 = vunpack.c.l.b16 %v618
        %v683 = vunpack.c.l.b16 %v619
        %v684 = vunpack.c.l.b16 %v620
        %v685 = vunpack.c.l.b16 %v621
        %v686 = vunpack.c.l.b16 %v622
        %v687 = vunpack.c.l.b16 %v623
        %v688 = vunpack.c.l.b16 %v624
        %v689 = vunpack.c.l.b16 %v625
        %v690 = vunpack.c.l.b16 %v626
        %v691 = vunpack.c.l.b16 %v627
        %v692 = vunpack.c.l.b16 %v628
        %v693 = vpack.c.b16 %v662, %v661
        %v694 = vpack.c.b16 %v664, %v663
        %v695 = vpack.c.b16 %v666, %v665
        %v696 = vpack.c.b16 %v668, %v667
        %v697 = vpack.c.b16 %v670, %v669
        %v698 = vpack.c.b16 %v672, %v671
        %v699 = vpack.c.b16 %v674, %v673
        %v700 = vpack.c.b16 %v676, %v675
        %v701 = vpack.c.b16 %v678, %v677
        %v702 = vpack.c.b16 %v680, %v679
        %v703 = vpack.c.b16 %v682, %v681
        %v704 = vpack.c.b16 %v684, %v683
        %v705 = vpack.c.b16 %v686, %v685
        %v706 = vpack.c.b16 %v688, %v687
        %v707 = vpack.c.b16 %v690, %v689
        %v708 = vpack.c.b16 %v692, %v691
        %725 = vmatpush.bf16.msra.mxu0 %v700
        %726 = vmatpush.bf16.msra.mxu0 %v699
        %727 = vmatpush.bf16.msra.mxu0 %v698
        %728 = vmatpush.bf16.msra.mxu0 %v697
        %729 = vmatpush.bf16.msra.mxu0 %v696
        %730 = vmatpush.bf16.msra.mxu0 %v695
        %731 = vmatpush.bf16.msra.mxu0 %v694
        %732 = vmatpush.bf16.msra.mxu0 %v693
        %733 = vmatmul.bf16.gmra.mxu0 %v315
        %v734 = vpop.f32.mrf.mxu0
        %v735 = vadd.f32 0.0, %v734
        %v736 = vpop.f32.mrf.mxu0
        %737 = vdwg.mxu0
        %738 = vmatpush.bf16.msra.mxu0 %v708
        %739 = vmatpush.bf16.msra.mxu0 %v707
        %740 = vmatpush.bf16.msra.mxu0 %v706
        %741 = vmatpush.bf16.msra.mxu0 %v705
        %742 = vmatpush.bf16.msra.mxu0 %v704
        %743 = vmatpush.bf16.msra.mxu0 %v703
        %744 = vmatpush.bf16.msra.mxu0 %v702
        %745 = vmatpush.bf16.msra.mxu0 %v701
        %746 = vmatmul.bf16.gmra.mxu0 %v316
        %v747 = vpop.f32.mrf.mxu0
        %v748 = vadd.f32 %v735, %v747
        %v749 = vpop.f32.mrf.mxu0
        %750 = vdwg.mxu0
        %v751 = vpack.c.bf16 %v593, %v438
        %v752 = vpack.c.bf16 %v748, %v748
        %v753 = vld [vmem:[%s2] sm:$0xf]
        %v754 = vld [vmem:[%s2 + $0x4] sm:$0xf]
        %v755 = vunpack.c.l.bf16 %v279
        %v756 = vunpack.c.h.bf16 %v279
        %v757 = vadd.f32 %v755, %v756
        %758 = vadd.xlane.f32.xlu0 %v757
        %v759 = vpop.xlane.xlu0 %758
        %v760 = vrcp.pop 256.0
        %v761 = vmul.f32 256.0, %v760
        %v762 = vsub.f32 1.0, %v761
        %v763 = vmul.f32 %v760, %v762
        %v764 = vadd.f32 %v760, %v763
        %vm765 = vweird.f32 %v760
        %v766 = vsel %vm765, %v760, %v764
        %v767 = vmul.f32 %v759, %v766
        %v768 = vld [vmem:[%s3] sm:$0xff]
        %v769 = vld [vmem:[%s3 + $0x8] sm:$0xff]
        %vm770 = vcmask 64512
        %v772 = vsel %vm770, %v768, 0
        %v775 = vsel %vm770, %v769, 0
        %777 = vmatpush.msra.mxu0 0.0
        %778 = vmatpush.msra.mxu0 0.0
        %779 = vmatpush.msra.mxu0 0.0
        %780 = vmatpush.msra.mxu0 0.0
        %781 = vmatpush.msra.mxu0 0.0
        %782 = vmatpush.msra.mxu0 0.0
        %783 = vmatpush.msra.mxu0 0.0
        %784 = vmatpush.msra.mxu0 0.0
        %785 = vmatpush.msra.mxu0 0.0
        %786 = vmatpush.msra.mxu0 0.0
        %787 = vmatpush.msra.mxu0 0.0
        %788 = vmatpush.msra.mxu0 0.0
        %789 = vmatpush.msra.mxu0 0.0
        %790 = vmatpush.msra.mxu0 0.0
        %791 = vmatpush.msra.mxu0 0.0
        %792 = vmatpush.msra.mxu0 %v767
        %793 = vmatmul.f32.gmra.mxu0 %v772
        %v794 = vpop.f32.mrf.mxu0
        %v795 = vadd.f32 0.0, %v794
        %796 = vmatmul.f32.gmra.mxu0 %v775
        %v797 = vpop.f32.mrf.mxu0
        %v798 = vadd.f32 0.0, %v797
        %799 = vdwg.mxu0
        %801 = vset.pattern.permute.xlu0 0
        %802 = vperm.xlu0 %801, %v795
        %v803 = vpop.permute.xlu0 %802
        %806 = vset.pattern.permute.xlu0 0
        %807 = vperm.xlu0 %806, %v798
        %v808 = vpop.permute.xlu0 %807
        %v812 = vunpack.c.l.b16 %v753
        %v813 = vunpack.c.l.b16 %v754
        %v814 = vpack.c.b16 %v813, %v812
        %vm815 = vcmask 195584
        %v817 = vsel %vm815, %v814, 0
        %vm819 = vcmask 1043456
        %v821 = vsel %vm819, %v752, 0
        %823 = vmatpush.bf16.msra.mxu0 0
        %824 = vmatpush.bf16.msra.mxu0 0
        %825 = vmatpush.bf16.msra.mxu0 0
        %826 = vmatpush.bf16.msra.mxu0 0
        %827 = vmatpush.bf16.msra.mxu0 0
        %828 = vmatpush.bf16.msra.mxu0 0
        %829 = vmatpush.bf16.msra.mxu0 %v821
        %830 = vmatpush.bf16.msra.mxu0 %v751
        %831 = vmatmul.bf16.gmra.mxu0 %v817
        %v832 = vpop.f32.mrf.mxu0
        %v833 = vadd.f32 %v803, %v832
        %v834 = vpop.f32.mrf.mxu0
        %v835 = vadd.f32 %v808, %v834
        %836 = vdwg.mxu0
        %v837 = vld [vmem:[%s4] sm:$0xff]
        %v838 = vld [vmem:[%s4 + $0x8] sm:$0xff]
        %840 = vset.pattern.permute.xlu0 0
        %841 = vperm.xlu0 %840, %v837
        %v842 = vpop.permute.xlu0 %841
        %845 = vset.pattern.permute.xlu0 0
        %846 = vperm.xlu0 %845, %v838
        %v847 = vpop.permute.xlu0 %846
        %v849 = vadd.f32 %v833, %v842
        %v850 = vadd.f32 %v835, %v847
        %v851 = vmul.f32 %v849, 0.5
        %v852 = vmul.f32 %v850, 0.5
        %v853 = vmul.f32 %v849, 0.70710677
        %v854 = vmul.f32 %v850, 0.70710677
        %v855 = vmul.f32 %v853, %v853
        %v856 = vmin.f32 16.0, %v855
        %v857 = vmul.f32 %v856, 2.1237322e-06
        %v858 = vadd.f32 %v857, 0.00028619796
        %v859 = vmul.f32 %v856, %v858
        %v860 = vadd.f32 %v859, 0.0036580483
        %v861 = vmul.f32 %v856, %v860
        %v862 = vadd.f32 %v861, 0.05243302
        %v863 = vmul.f32 %v856, %v862
        %v864 = vadd.f32 %v863, 0.18741608
        %v865 = vmul.f32 %v856, %v864
        %v866 = vadd.f32 %v865, 1.1283791
        %v867 = vmul.f32 %v853, %v866
        %v868 = vmul.f32 %v856, 3.8918573e-05
        %v869 = vadd.f32 %v868, 0.001143296
        %v870 = vmul.f32 %v856, %v869
        %v871 = vadd.f32 %v870, 0.014752088
        %v872 = vmul.f32 %v856, %v871
        %v873 = vadd.f32 %v872, 0.112945676
        %v874 = vmul.f32 %v856, %v873
        %v875 = vadd.f32 %v874, 0.4994258
        %v876 = vmul.f32 %v856, %v875
        %v877 = vadd.f32 %v876, 1.0
        %v878 = vrcp.pop %v877
        %v879 = vmul.f32 %v877, %v878
        %v880 = vsub.f32 1.0, %v879
        %v881 = vmul.f32 %v878, %v880
        %v882 = vadd.f32 %v878, %v881
        %vm883 = vweird.f32 %v877
        %vm884 = vweird.f32 %v878
        %vm885 = vmor %vm883, %vm884
        %v886 = vsel %vm885, %v878, %v882
        %v887 = vand.u32 2147483647, %v877
        %vm888 = vcmp.eq.f32.partialorder %v887, 8.507059e+37
        %v889 = vand.u32 %v877, 2147483648
        %v890 = vor.u32 1.1754944e-38, %v889
        %v891 = vsel %vm888, %v890, %v886
        %v892 = vmul.f32 %v867, %v891
        %v893 = vmin.f32 %v892, 1.0
        %v894 = vmax.f32 %v893, -1.0
        %v895 = vmul.f32 %v854, %v854
        %v896 = vmin.f32 16.0, %v895
        %v897 = vmul.f32 %v896, 2.1237322e-06
        %v898 = vadd.f32 %v897, 0.00028619796
        %v899 = vmul.f32 %v896, %v898
        %v900 = vadd.f32 %v899, 0.0036580483
        %v901 = vmul.f32 %v896, %v900
        %v902 = vadd.f32 %v901, 0.05243302
        %v903 = vmul.f32 %v896, %v902
        %v904 = vadd.f32 %v903, 0.18741608
        %v905 = vmul.f32 %v896, %v904
        %v906 = vadd.f32 %v905, 1.1283791
        %v907 = vmul.f32 %v854, %v906
        %v908 = vmul.f32 %v896, 3.8918573e-05
        %v909 = vadd.f32 %v908, 0.001143296
        %v910 = vmul.f32 %v896, %v909
        %v911 = vadd.f32 %v910, 0.014752088
        %v912 = vmul.f32 %v896, %v911
        %v913 = vadd.f32 %v912, 0.112945676
        %v914 = vmul.f32 %v896, %v913
        %v915 = vadd.f32 %v914, 0.4994258
        %v916 = vmul.f32 %v896, %v915
        %v917 = vadd.f32 %v916, 1.0
        %v918 = vrcp.pop %v917
        %v919 = vmul.f32 %v917, %v918
        %v920 = vsub.f32 1.0, %v919
        %v921 = vmul.f32 %v918, %v920
        %v922 = vadd.f32 %v918, %v921
        %vm923 = vweird.f32 %v917
        %vm924 = vweird.f32 %v918
        %vm925 = vmor %vm923, %vm924
        %v926 = vsel %vm925, %v918, %v922
        %v927 = vand.u32 2147483647, %v917
        %vm928 = vcmp.eq.f32.partialorder %v927, 8.507059e+37
        %v929 = vand.u32 %v917, 2147483648
        %v930 = vor.u32 1.1754944e-38, %v929
        %v931 = vsel %vm928, %v930, %v926
        %v932 = vmul.f32 %v907, %v931
        %v933 = vmin.f32 %v932, 1.0
        %v934 = vmax.f32 %v933, -1.0
        %v935 = vadd.f32 %v894, 1.0
        %v936 = vadd.f32 %v934, 1.0
        %v937 = vmul.f32 %v851, %v935
        %v938 = vmul.f32 %v852, %v936
        %939 = vst [vmem:[%s272] sm:$0xff] %v937
        %940 = vst [vmem:[%s272 + $0x8] sm:$0xff] %v938
        %s941 = sand.u32 %s159, 1
        %s942 = scalar_lea.sflag [#allocation4], %s941
        %s943 = sand.u32 %s159, 1
        %s944 = smul.addr %s943, 16
        %s945 = scalar_lea.vmem [#allocation5], %s944
        // Predicated region
        $region45: #{tpu_custom_call.1} parent=39 // pred_check
          %p946 = pneg %p169
        $region46: #{tpu_custom_call.1} parent=39 // pred_check_branch
          %948 = sbr.rel (%p946) target = $region48
        $region47: #{tpu_custom_call.1} parent=39 // pred_region
          %950 = vsyncadd %s942, 0
          %s951 = smul.addr %s26, 4
          %s952 = sadd.s32 %s27, %s951
          %s953 = smul.addr %s952, 8
          %s954 = scalar_lea.hbm %s5, %s953
          %s955 = sshll.u32 %s945, 4
          %s956 = int_to_ptr.vmem [resolvable:$true] %s955
          %s957 = sshll.u32 %s954, 4
          %s958 = int_to_ptr.hbm [resolvable:$true] %s957
          %963 = dma.vmem_to_hbm [thread:$0]  %s956, 256, %s958, %s942, 128, 256, 8
        $region48: #{tpu_custom_call.1} parent=39 // pred_fallthru
          _
      $region40: #{tpu_custom_call.1} parent=5 // pred_fallthru
        _
      %p964 = scmp.le.s32.totalorder 2, %s17
      // Predicated region
      $region49: #{tpu_custom_call.1} parent=5 // pred_check
        %p965 = pneg %p964
      $region50: #{tpu_custom_call.1} parent=5 // pred_check_branch
        %967 = sbr.rel (%p965) target = $region52
      $region51: #{tpu_custom_call.1} parent=5 // pred_region
        %s968 = ssub.s32 %s17, 2
        // Predicated region
        $region53: #{tpu_custom_call.1} parent=51 // pred_check
          %p969 = pneg %p175
        $region54: #{tpu_custom_call.1} parent=51 // pred_check_branch
          %971 = sbr.rel (%p969) target = $region56
        $region55: #{tpu_custom_call.1} parent=51 // pred_region
          %s972 = sand.u32 %s160, 1
          %s973 = scalar_lea.sflag [#allocation4], %s972
          %s974 = sand.u32 %s160, 1
          %s975 = smul.addr %s974, 16
          %s976 = scalar_lea.vmem [#allocation5], %s975
          %978 = dma.done %s973, 256
        $region56: #{tpu_custom_call.1} parent=51 // pred_fallthru
          _
      $region52: #{tpu_custom_call.1} parent=5 // pred_fallthru
        _
    $region6: #{tpu_custom_call.1} parent=1 // loop_footer
      %s21 = sadd.s32 1, %s17
    $region7: #{tpu_custom_call.1} parent=1 // loop_footer_branch
      %16 = sbr.rel target = $region3
    $region8: #{tpu_custom_call.1} parent=1 // loop_exit
      _
    %979 = vsyncpa [#allocation3], 1
    %s980 = scalar_lea.sflag [#allocation3], 1
    %981 = vsyncpa %s980, 1
    %982 = vsyncpa [#allocation4], 1
    %s983 = scalar_lea.sflag [#allocation4], 1
    %984 = vsyncpa %s983, 1

</llo_original>
